<compile_context>
chip_gen: v5e
topology: v5e:2x2
jax: 0.10.0
libtpu: 0.0.40
codegen_flags: <defaults>
</compile_context>

<pallas_src>
import jax
import jax.numpy as jnp
from jax.experimental import pallas as pl
from jax.experimental.pallas import tpu as pltpu

EPS = 1e-5


def base_gnn_kernel(n_ref,
                    a_ref, zc_ref, pool_ref,
                    gamma_ref, beta_ref, invc_ref, res_ref, wl_ref, bl_ref,
                    out_ref,
                    h_acc_ref, acc_ph_ref, acc_s2_ref):
    i = pl.program_id(0)          # node-row block
    k = pl.program_id(1)          # contraction block (columns of a_hat / rows of zc)
    ni = pl.num_programs(0)
    nk = pl.num_programs(1)

    @pl.when((i == 0) & (k == 0))
    def _init_global():
        acc_ph_ref[...] = jnp.zeros_like(acc_ph_ref)
        acc_s2_ref[...] = jnp.zeros_like(acc_s2_ref)

    @pl.when(k == 0)
    def _init_rows():
        h_acc_ref[...] = jnp.zeros_like(h_acc_ref)

    # GCN aggregation, K-tiled: h[rows i] += A_hat[i, k] @ (X Wc)[k]   (bf16 MXU, f32 acc)
    h_acc_ref[...] += jnp.dot(a_ref[...], zc_ref[...],
                              preferred_element_type=jnp.float32)

    @pl.when(k == nk - 1)
    def _accumulate():
        h = h_acc_ref[...]                       # [blk, h_pad] f32; padded node rows are 0
        # Per-graph sums; the last membership row is all ones -> BN sum(h) from same matmul.
        acc_ph_ref[...] += jnp.dot(pool_ref[...], h, preferred_element_type=jnp.float32)
        acc_s2_ref[...] += jnp.sum(h * h, axis=0, keepdims=True)

    @pl.when((i == ni - 1) & (k == nk - 1))
    def _finalize():
        g_pad = acc_ph_ref.shape[0]
        n_f = jnp.maximum(n_ref[0], 1).astype(jnp.float32)
        ph = acc_ph_ref[...]
        mean = ph[g_pad - 1:g_pad, :] / n_f                      # ones-row = sum over nodes
        var = acc_s2_ref[...] / n_f - mean * mean
        var = jnp.maximum(var, 0.0)                              # one-pass cancellation guard
        inv_std = jax.lax.rsqrt(var + EPS)
        # BN is a per-channel affine and mean-pool rows sum to 1 -> commutes with pooling.
        pooled = ph * invc_ref[...]                              # per-graph mean pool
        y = (pooled - mean) * (inv_std * gamma_ref[...]) + beta_ref[...] + res_ref[...]
        out_ref[...] = jnp.dot(y, wl_ref[...],
                               preferred_element_type=jnp.float32) + bl_ref[...]


def _build_a_hat(edge_index, n):
    """Dense GCN adjacency: add self loops, symmetric normalization (wrapper side)."""
    src, dst = edge_index[0], edge_index[1]
    adj = jnp.zeros((n, n), jnp.float32).at[dst, src].add(1.0)
    adj = adj + jnp.eye(n, dtype=jnp.float32)
    deg = jnp.sum(adj, axis=1)
    dinv = jax.lax.rsqrt(deg)
    return dinv[:, None] * adj * dinv[None, :]


def base_gnn_forward(x, edge_index, batch, num_graphs, params, *, block_n=512):
    n_real, cin = x.shape
    wc, bc, gamma, beta, wr, br, wl, bl = params   # bc unused: bias before BN cancels
    hidden = wc.shape[1]
    num_classes = wl.shape[1]

    # ---- graph structure (dense, wrapper side) -------------------------------------
    a_hat = _build_a_hat(edge_index, n_real)                              # [N, N] f32
    onehot = jax.nn.one_hot(batch, num_graphs, dtype=jnp.float32).T       # [G, N] {0,1}
    counts = jnp.sum(onehot, axis=1, keepdims=True)                       # [G, 1]
    inv_counts = jnp.where(counts > 0, 1.0 / jnp.maximum(counts, 1.0), 0.0)

    # ---- TPU-friendly, lane-dense padded shapes ------------------------------------
    blk = int(min(block_n, max(128, pl.next_power_of_2(n_real))))         # node tile
    n_pad = pl.cdiv(n_real, blk) * blk
    h_pad = max(128, pl.cdiv(hidden, 128) * 128)
    c_pad = max(128, pl.cdiv(num_classes, 128) * 128)
    g_pad = max(8, pl.cdiv(num_graphs + 1, 8) * 8)   # +1 spare "ones" row for sum(h)

    a_hat_p = jnp.pad(a_hat, ((0, n_pad - n_real),
                              (0, n_pad - n_real))).astype(jnp.bfloat16)

    # Hoisted one-time projections (run by XLA, not inside the per-step loop).
    wc_p = jnp.pad(wc, ((0, 0), (0, h_pad - hidden)))
    x_p = jnp.pad(x.astype(jnp.float32), ((0, n_pad - n_real), (0, 0)))
    zc_p = jnp.dot(x_p, wc_p).astype(jnp.bfloat16)                        # [n_pad, h_pad]

    # Residual pooled once: P @ (X Wr + br) == (P @ X) Wr + br  -> tiny [G, hidden].
    res = jnp.dot(jnp.dot(onehot * inv_counts, x), wr) + br
    res_p = jnp.pad(res, ((0, g_pad - num_graphs), (0, h_pad - hidden)))

    # Exact {0,1} membership matrix in bf16; last row = ones over real nodes.
    pool = jnp.zeros((g_pad, n_pad), jnp.float32)
    pool = pool.at[:num_graphs, :n_real].set(onehot)
    pool = pool.at[g_pad - 1, :n_real].set(1.0)
    pool_p = pool.astype(jnp.bfloat16)

    invc_p = jnp.pad(inv_counts, ((0, g_pad - num_graphs), (0, 0)))       # [g_pad, 1]
    gamma_p = jnp.pad(gamma, ((0, 0), (0, h_pad - hidden)))
    beta_p = jnp.pad(beta, ((0, 0), (0, h_pad - hidden)))
    wl_p = jnp.pad(wl, ((0, h_pad - hidden), (0, c_pad - num_classes)))
    bl_p = jnp.pad(bl, ((0, 0), (0, c_pad - num_classes)))

    n_arr = jnp.asarray([n_real], jnp.int32)

    grid = (n_pad // blk, n_pad // blk)
    const = lambda i, k, n_sp: (0, 0)

    # VMEM budget: double-buffered streamed tiles + resident consts + scratch + headroom,
    # clamped below the physical per-generation capacity (v7x: 64 MiB/TC).
    need = (2 * blk * blk * 2                    # a_hat tiles (bf16)
            + 2 * blk * h_pad * 2                # zc tiles (bf16)
            + 2 * g_pad * blk * 2                # pool tiles (bf16)
            + 2 * g_pad * c_pad * 4              # output block
            + blk * h_pad * 4 + g_pad * h_pad * 4 + 8 * h_pad * 4   # scratch
            + 2 * (h_pad * c_pad + g_pad * h_pad + 4 * h_pad + 8 * 128) * 4)  # consts
    try:
        vmem_cap = int(pltpu.get_tpu_info().vmem_capacity_bytes)
    except Exception:
        vmem_cap = 64 << 20                      # safe on every TPU generation
    vmem_limit = int(min(max(need + (8 << 20), 16 << 20), vmem_cap - (8 << 20)))

    out = pl.pallas_call(
        base_gnn_kernel,
        out_shape=jax.ShapeDtypeStruct((g_pad, c_pad), jnp.float32),
        grid_spec=pltpu.PrefetchScalarGridSpec(
            num_scalar_prefetch=1,
            grid=grid,
            in_specs=[
                pl.BlockSpec((blk, blk), lambda i, k, n_sp: (i, k)),    # a_hat tile (bf16)
                pl.BlockSpec((blk, h_pad), lambda i, k, n_sp: (k, 0)),  # zc tile (bf16)
                pl.BlockSpec((g_pad, blk), lambda i, k, n_sp: (0, i)),  # membership tile
                pl.BlockSpec((1, h_pad), const),                        # gamma
                pl.BlockSpec((1, h_pad), const),                        # beta
                pl.BlockSpec((g_pad, 1), const),                        # 1 / counts
                pl.BlockSpec((g_pad, h_pad), const),                    # pooled residual
                pl.BlockSpec((h_pad, c_pad), const),                    # wl
                pl.BlockSpec((1, c_pad), const),                        # bl
            ],
            out_specs=pl.BlockSpec((g_pad, c_pad), const),
            scratch_shapes=[
                pltpu.VMEM((blk, h_pad), jnp.float32),    # h rows, accumulated over k
                pltpu.VMEM((g_pad, h_pad), jnp.float32),  # per-graph sums (+ ones row)
                pltpu.VMEM((1, h_pad), jnp.float32),      # sum(h * h) for BN variance
            ]),
        compiler_params=pltpu.CompilerParams(
            dimension_semantics=("arbitrary", "arbitrary"),   # both axes are reductions
            vmem_limit_bytes=vmem_limit),
    )(n_arr, a_hat_p, zc_p, pool_p, gamma_p, beta_p, invc_p, res_p, wl_p, bl_p)

    return out[:num_graphs, :num_classes]


def reference_forward(x, edge_index, batch, num_graphs, params):
    """Pure-JAX reference with the same bf16 MXU-feed casts as the kernel."""
    wc, bc, gamma, beta, wr, br, wl, bl = params
    n = x.shape[0]
    a_hat = _build_a_hat(edge_index, n).astype(jnp.bfloat16)
    zc = jnp.dot(x, wc).astype(jnp.bfloat16)
    h = jnp.dot(a_hat, zc, preferred_element_type=jnp.float32) + bc
    mean = jnp.mean(h, axis=0, keepdims=True)
    var = jnp.mean((h - mean) ** 2, axis=0, keepdims=True)
    h = (h - mean) * jax.lax.rsqrt(var + EPS) * gamma + beta
    h = h + (jnp.dot(x, wr) + br)
    onehot = jax.nn.one_hot(batch, num_graphs, dtype=jnp.float32).T
    pool = onehot / jnp.maximum(jnp.sum(onehot, axis=1, keepdims=True), 1.0)
    pooled = jnp.dot(pool, h)
    return jnp.dot(pooled, wl) + bl


def init_params(key, in_channels, hidden_dim, num_classes):
    k = jax.random.split(key, 6)
    wc = jax.random.normal(k[0], (in_channels, hidden_dim), jnp.float32) / jnp.sqrt(in_channels)
    bc = jnp.zeros((1, hidden_dim), jnp.float32)
    gamma = jnp.ones((1, hidden_dim), jnp.float32)
    beta = jnp.zeros((1, hidden_dim), jnp.float32)
    wr = jax.random.normal(k[1], (in_channels, hidden_dim), jnp.float32) / jnp.sqrt(in_channels)
    br = jax.random.normal(k[2], (1, hidden_dim), jnp.float32) * 0.01
    wl = jax.random.normal(k[3], (hidden_dim, num_classes), jnp.float32) / jnp.sqrt(hidden_dim)
    bl = jax.random.normal(k[4], (1, num_classes), jnp.float32) * 0.01
    return (wc, bc, gamma, beta, wr, br, wl, bl)


if __name__ == "__main__":
    key = jax.random.PRNGKey(0)
    kx, ke, kp = jax.random.split(key, 3)

    N, IN_CH, HIDDEN, NUM_CLASSES, NUM_GRAPHS, E = 200, 16, 32, 8, 4, 200

    x = jax.random.normal(kx, (N, IN_CH), jnp.float32)

    src = jax.random.randint(ke, (E,), 0, N)
    dst = jax.random.randint(jax.random.fold_in(ke, 1), (E,), 0, N)
    edge_index = jnp.stack([jnp.concatenate([src, dst]),
                            jnp.concatenate([dst, src])], axis=0)

    batch = jnp.repeat(jnp.arange(NUM_GRAPHS, dtype=jnp.int32), N // NUM_GRAPHS)

    params = init_params(kp, IN_CH, HIDDEN, NUM_CLASSES)

    logits = base_gnn_forward(x, edge_index, batch, NUM_GRAPHS, params)
    logits = jax.block_until_ready(logits)

    assert logits.shape == (NUM_GRAPHS, NUM_CLASSES)
    assert bool(jnp.all(jnp.isfinite(logits)))

    ref = jax.block_until_ready(
        reference_forward(x, edge_index, batch, NUM_GRAPHS, params))
    max_err = float(jnp.max(jnp.abs(logits - ref)))
    assert max_err < 2e-2, f"max abs diff vs reference: {max_err}"

    print("KERNEL_OK")
</pallas_src>

<mosaic_0001>
module attributes {stable_mosaic.version = 11 : i64} {
  func.func @base_gnn_kernel(%arg0: i32, %arg1: i32, %arg2: memref<1xi32, #tpu.memory_space<smem>>, %arg3: memref<256x256xbf16, #tpu.memory_space<vmem>>, %arg4: memref<256x128xbf16, #tpu.memory_space<vmem>>, %arg5: memref<8x256xbf16, #tpu.memory_space<vmem>>, %arg6: memref<1x128xf32, #tpu.memory_space<vmem>>, %arg7: memref<1x128xf32, #tpu.memory_space<vmem>>, %arg8: memref<8x1xf32, #tpu.memory_space<vmem>>, %arg9: memref<8x128xf32, #tpu.memory_space<vmem>>, %arg10: memref<128x128xf32, #tpu.memory_space<vmem>>, %arg11: memref<1x128xf32, #tpu.memory_space<vmem>>, %arg12: memref<8x128xf32, #tpu.memory_space<vmem>>, %arg13: memref<256x128xf32, #tpu.memory_space<vmem>>, %arg14: memref<8x128xf32, #tpu.memory_space<vmem>>, %arg15: memref<1x128xf32, #tpu.memory_space<vmem>>) attributes {dimension_semantics = [#tpu.dimension_semantics<arbitrary>, #tpu.dimension_semantics<arbitrary>], iteration_bounds = array<i64: 1, 1>, scalar_prefetch = 1 : i64, scratch_operands = 3 : i64, tpu.core_type = #tpu.core_type<tc>, window_params = [{transform_indices = @transform_0, window_bounds = array<i64: 256, 256>}, {transform_indices = @transform_1, window_bounds = array<i64: 256, 128>}, {transform_indices = @transform_2, window_bounds = array<i64: 8, 256>}, {pipeline_mode = #tpu.pipeline_mode<synchronous>, transform_indices = @transform_3, window_bounds = array<i64: 1, 128>}, {pipeline_mode = #tpu.pipeline_mode<synchronous>, transform_indices = @transform_4, window_bounds = array<i64: 1, 128>}, {pipeline_mode = #tpu.pipeline_mode<synchronous>, transform_indices = @transform_5, window_bounds = array<i64: 8, 1>}, {pipeline_mode = #tpu.pipeline_mode<synchronous>, transform_indices = @transform_6, window_bounds = array<i64: 8, 128>}, {pipeline_mode = #tpu.pipeline_mode<synchronous>, transform_indices = @transform_7, window_bounds = array<i64: 128, 128>}, {pipeline_mode = #tpu.pipeline_mode<synchronous>, transform_indices = @transform_8, window_bounds = array<i64: 1, 128>}, {pipeline_mode = #tpu.pipeline_mode<synchronous>, transform_indices = @transform_9, window_bounds = array<i64: 8, 128>}]} {
    %c0_i32 = arith.constant 0 : i32
    %0 = arith.cmpi eq, %arg0, %c0_i32 : i32
    %c0_i32_0 = arith.constant 0 : i32
    %1 = arith.cmpi eq, %arg1, %c0_i32_0 : i32
    %2 = arith.andi %0, %1 : i1
    %3 = arith.extui %2 : i1 to i32
    %c0_i32_1 = arith.constant 0 : i32
    %4 = arith.cmpi ne, %3, %c0_i32_1 : i32
    scf.if %4 {
      %cst_16 = arith.constant 0.000000e+00 : f32
      %22 = vector.broadcast %cst_16 : f32 to vector<8x128xf32>
      %c0_17 = arith.constant 0 : index
      %c0_18 = arith.constant 0 : index
      %23 = vector.load %arg14[%c0_17, %c0_18] : memref<8x128xf32, #tpu.memory_space<vmem>>, vector<8x128xf32>
      tpu.vector_store %arg14[%c0_17, %c0_18], %22 {strides = array<i32>} : memref<8x128xf32, #tpu.memory_space<vmem>>, vector<8x128xf32>,
      %cst_19 = arith.constant 0.000000e+00 : f32
      %24 = vector.broadcast %cst_19 : f32 to vector<1x128xf32>
      %c0_20 = arith.constant 0 : index
      %c0_21 = arith.constant 0 : index
      %25 = vector.load %arg15[%c0_20, %c0_21] : memref<1x128xf32, #tpu.memory_space<vmem>>, vector<1x128xf32>
      tpu.vector_store %arg15[%c0_20, %c0_21], %24 {strides = array<i32>} : memref<1x128xf32, #tpu.memory_space<vmem>>, vector<1x128xf32>,
    } else {
    }
    %c0_i32_2 = arith.constant 0 : i32
    %5 = arith.cmpi eq, %arg1, %c0_i32_2 : i32
    %6 = arith.extui %5 : i1 to i32
    %c0_i32_3 = arith.constant 0 : i32
    %7 = arith.cmpi ne, %6, %c0_i32_3 : i32
    scf.if %7 {
      %cst_16 = arith.constant 0.000000e+00 : f32
      %22 = vector.broadcast %cst_16 : f32 to vector<256x128xf32>
      %c0_17 = arith.constant 0 : index
      %c0_18 = arith.constant 0 : index
      %23 = vector.load %arg13[%c0_17, %c0_18] : memref<256x128xf32, #tpu.memory_space<vmem>>, vector<256x128xf32>
      tpu.vector_store %arg13[%c0_17, %c0_18], %22 {strides = array<i32>} : memref<256x128xf32, #tpu.memory_space<vmem>>, vector<256x128xf32>,
    } else {
    }
    %c0 = arith.constant 0 : index
    %c0_4 = arith.constant 0 : index
    %8 = vector.load %arg13[%c0, %c0_4] : memref<256x128xf32, #tpu.memory_space<vmem>>, vector<256x128xf32>
    %c0_5 = arith.constant 0 : index
    %c0_6 = arith.constant 0 : index
    %9 = vector.load %arg3[%c0_5, %c0_6] : memref<256x256xbf16, #tpu.memory_space<vmem>>, vector<256x256xbf16>
    %c0_7 = arith.constant 0 : index
    %c0_8 = arith.constant 0 : index
    %10 = vector.load %arg4[%c0_7, %c0_8] : memref<256x128xbf16, #tpu.memory_space<vmem>>, vector<256x128xbf16>
    %cst = arith.constant dense<0.000000e+00> : vector<256x128xf32>
    %11 = tpu.matmul %9, %10, %cst {dimension_numbers = #tpu.dot_dimension_numbers<[1], [0], [0], [1], [0, 0, 1, 1], [], []>} : vector<256x256xbf16>, vector<256x128xbf16>, vector<256x128xf32> -> vector<256x128xf32>
    %12 = arith.addf %8, %11 : vector<256x128xf32>
    %c0_9 = arith.constant 0 : index
    %c0_10 = arith.constant 0 : index
    %13 = vector.load %arg13[%c0_9, %c0_10] : memref<256x128xf32, #tpu.memory_space<vmem>>, vector<256x128xf32>
    tpu.vector_store %arg13[%c0_9, %c0_10], %12 {strides = array<i32>} : memref<256x128xf32, #tpu.memory_space<vmem>>, vector<256x128xf32>,
    %c0_i32_11 = arith.constant 0 : i32
    %14 = arith.cmpi eq, %arg1, %c0_i32_11 : i32
    %15 = arith.extui %14 : i1 to i32
    %c0_i32_12 = arith.constant 0 : i32
    %16 = arith.cmpi ne, %15, %c0_i32_12 : i32
    scf.if %16 {
      %c0_16 = arith.constant 0 : index
      %c0_17 = arith.constant 0 : index
      %22 = vector.load %arg13[%c0_16, %c0_17] : memref<256x128xf32, #tpu.memory_space<vmem>>, vector<256x128xf32>
      %c0_18 = arith.constant 0 : index
      %c0_19 = arith.constant 0 : index
      %23 = vector.load %arg14[%c0_18, %c0_19] : memref<8x128xf32, #tpu.memory_space<vmem>>, vector<8x128xf32>
      %c0_20 = arith.constant 0 : index
      %c0_21 = arith.constant 0 : index
      %24 = vector.load %arg5[%c0_20, %c0_21] : memref<8x256xbf16, #tpu.memory_space<vmem>>, vector<8x256xbf16>
      %cst_22 = arith.constant dense<0.000000e+00> : vector<8x128xf32>
      %25 = tpu.matmul %24, %22, %cst_22 {dimension_numbers = #tpu.dot_dimension_numbers<[1], [0], [0], [1], [0, 0, 1, 1], [], []>} : vector<8x256xbf16>, vector<256x128xf32>, vector<8x128xf32> -> vector<8x128xf32>
      %26 = arith.addf %23, %25 : vector<8x128xf32>
      %c0_23 = arith.constant 0 : index
      %c0_24 = arith.constant 0 : index
      %27 = vector.load %arg14[%c0_23, %c0_24] : memref<8x128xf32, #tpu.memory_space<vmem>>, vector<8x128xf32>
      tpu.vector_store %arg14[%c0_23, %c0_24], %26 {strides = array<i32>} : memref<8x128xf32, #tpu.memory_space<vmem>>, vector<8x128xf32>,
      %c0_25 = arith.constant 0 : index
      %c0_26 = arith.constant 0 : index
      %28 = vector.load %arg15[%c0_25, %c0_26] : memref<1x128xf32, #tpu.memory_space<vmem>>, vector<1x128xf32>
      %29 = arith.mulf %22, %22 : vector<256x128xf32>
      %cst_27 = arith.constant dense<0.000000e+00> : vector<128xf32>
      %30 = vector.multi_reduction <add>, %29, %cst_27 [0] : vector<256x128xf32> to vector<128xf32>
      %31 = vector.shape_cast %30 : vector<128xf32> to vector<1x128xf32>
      %32 = arith.addf %28, %31 : vector<1x128xf32>
      %c0_28 = arith.constant 0 : index
      %c0_29 = arith.constant 0 : index
      %33 = vector.load %arg15[%c0_28, %c0_29] : memref<1x128xf32, #tpu.memory_space<vmem>>, vector<1x128xf32>
      tpu.vector_store %arg15[%c0_28, %c0_29], %32 {strides = array<i32>} : memref<1x128xf32, #tpu.memory_space<vmem>>, vector<1x128xf32>,
    } else {
    }
    %c0_i32_13 = arith.constant 0 : i32
    %17 = arith.cmpi eq, %arg0, %c0_i32_13 : i32
    %c0_i32_14 = arith.constant 0 : i32
    %18 = arith.cmpi eq, %arg1, %c0_i32_14 : i32
    %19 = arith.andi %17, %18 : i1
    %20 = arith.extui %19 : i1 to i32
    %c0_i32_15 = arith.constant 0 : i32
    %21 = arith.cmpi ne, %20, %c0_i32_15 : i32
    scf.if %21 {
      %c0_16 = arith.constant 0 : index
      %22 = memref.load %arg2[%c0_16] : memref<1xi32, #tpu.memory_space<smem>>
      %c1_i32 = arith.constant 1 : i32
      %23 = arith.maxsi %22, %c1_i32 : i32
      %24 = arith.sitofp %23 : i32 to f32
      %c0_17 = arith.constant 0 : index
      %c0_18 = arith.constant 0 : index
      %25 = vector.load %arg14[%c0_17, %c0_18] : memref<8x128xf32, #tpu.memory_space<vmem>>, vector<8x128xf32>
      %26 = vector.extract_strided_slice %25 {offsets = [7, 0], sizes = [1, 128], strides = [1, 1]} : vector<8x128xf32> to vector<1x128xf32>
      %27 = vector.broadcast %24 : f32 to vector<1x128xf32>
      %28 = arith.divf %26, %27 : vector<1x128xf32>
      %c0_19 = arith.constant 0 : index
      %c0_20 = arith.constant 0 : index
      %29 = vector.load %arg15[%c0_19, %c0_20] : memref<1x128xf32, #tpu.memory_space<vmem>>, vector<1x128xf32>
      %30 = vector.broadcast %24 : f32 to vector<1x128xf32>
      %31 = arith.divf %29, %30 : vector<1x128xf32>
      %32 = arith.mulf %28, %28 : vector<1x128xf32>
      %33 = arith.subf %31, %32 : vector<1x128xf32>
      %cst_21 = arith.constant 0.000000e+00 : f32
      %34 = vector.broadcast %cst_21 : f32 to vector<1x128xf32>
      %35 = arith.maximumf %33, %34 : vector<1x128xf32>
      %cst_22 = arith.constant 9.99999974E-6 : f32
      %36 = vector.broadcast %cst_22 : f32 to vector<1x128xf32>
      %37 = arith.addf %35, %36 : vector<1x128xf32>
      %38 = math.rsqrt %37 : vector<1x128xf32>
      %c0_23 = arith.constant 0 : index
      %c0_24 = arith.constant 0 : index
      %39 = vector.load %arg8[%c0_23, %c0_24] : memref<8x1xf32, #tpu.memory_space<vmem>>, vector<8x1xf32>
      %40 = vector.broadcast %39 : vector<8x1xf32> to vector<8x128xf32>
      %41 = arith.mulf %25, %40 : vector<8x128xf32>
      %42 = vector.broadcast %28 : vector<1x128xf32> to vector<8x128xf32>
      %43 = arith.subf %41, %42 : vector<8x128xf32>
      %c0_25 = arith.constant 0 : index
      %c0_26 = arith.constant 0 : index
      %44 = vector.load %arg6[%c0_25, %c0_26] : memref<1x128xf32, #tpu.memory_space<vmem>>, vector<1x128xf32>
      %45 = arith.mulf %38, %44 : vector<1x128xf32>
      %46 = vector.broadcast %45 : vector<1x128xf32> to vector<8x128xf32>
      %47 = arith.mulf %43, %46 : vector<8x128xf32>
      %c0_27 = arith.constant 0 : index
      %c0_28 = arith.constant 0 : index
      %48 = vector.load %arg7[%c0_27, %c0_28] : memref<1x128xf32, #tpu.memory_space<vmem>>, vector<1x128xf32>
      %49 = vector.broadcast %48 : vector<1x128xf32> to vector<8x128xf32>
      %50 = arith.addf %47, %49 : vector<8x128xf32>
      %c0_29 = arith.constant 0 : index
      %c0_30 = arith.constant 0 : index
      %51 = vector.load %arg9[%c0_29, %c0_30] : memref<8x128xf32, #tpu.memory_space<vmem>>, vector<8x128xf32>
      %52 = arith.addf %50, %51 : vector<8x128xf32>
      %c0_31 = arith.constant 0 : index
      %c0_32 = arith.constant 0 : index
      %53 = vector.load %arg10[%c0_31, %c0_32] : memref<128x128xf32, #tpu.memory_space<vmem>>, vector<128x128xf32>
      %cst_33 = arith.constant dense<0.000000e+00> : vector<8x128xf32>
      %54 = tpu.matmul %52, %53, %cst_33 {dimension_numbers = #tpu.dot_dimension_numbers<[1], [0], [0], [1], [0, 0, 1, 1], [], []>} : vector<8x128xf32>, vector<128x128xf32>, vector<8x128xf32> -> vector<8x128xf32>
      %c0_34 = arith.constant 0 : index
      %c0_35 = arith.constant 0 : index
      %55 = vector.load %arg11[%c0_34, %c0_35] : memref<1x128xf32, #tpu.memory_space<vmem>>, vector<1x128xf32>
      %56 = vector.broadcast %55 : vector<1x128xf32> to vector<8x128xf32>
      %57 = arith.addf %54, %56 : vector<8x128xf32>
      %c0_36 = arith.constant 0 : index
      %c0_37 = arith.constant 0 : index
      %58 = vector.load %arg12[%c0_36, %c0_37] : memref<8x128xf32, #tpu.memory_space<vmem>>, vector<8x128xf32>
      tpu.vector_store %arg12[%c0_36, %c0_37], %57 {strides = array<i32>} : memref<8x128xf32, #tpu.memory_space<vmem>>, vector<8x128xf32>,
    } else {
    }
    return
  }
  func.func @transform_0(%arg0: i32, %arg1: i32, %arg2: memref<1xi32, #tpu.memory_space<smem>>) -> (i32, i32) {
    %c0_i32 = arith.constant 0 : i32
    return %arg0, %arg1 : i32, i32
  }
  func.func @transform_1(%arg0: i32, %arg1: i32, %arg2: memref<1xi32, #tpu.memory_space<smem>>) -> (i32, i32) {
    %c0_i32 = arith.constant 0 : i32
    %c0_i32_0 = arith.constant 0 : i32
    return %arg1, %c0_i32 : i32, i32
  }
  func.func @transform_2(%arg0: i32, %arg1: i32, %arg2: memref<1xi32, #tpu.memory_space<smem>>) -> (i32, i32) {
    %c0_i32 = arith.constant 0 : i32
    %c0_i32_0 = arith.constant 0 : i32
    return %c0_i32, %arg0 : i32, i32
  }
  func.func @transform_3(%arg0: i32, %arg1: i32, %arg2: memref<1xi32, #tpu.memory_space<smem>>) -> (i32, i32) {
    %c0_i32 = arith.constant 0 : i32
    %c0_i32_0 = arith.constant 0 : i32
    %c0_i32_1 = arith.constant 0 : i32
    return %c0_i32, %c0_i32_0 : i32, i32
  }
  func.func @transform_4(%arg0: i32, %arg1: i32, %arg2: memref<1xi32, #tpu.memory_space<smem>>) -> (i32, i32) {
    %c0_i32 = arith.constant 0 : i32
    %c0_i32_0 = arith.constant 0 : i32
    %c0_i32_1 = arith.constant 0 : i32
    return %c0_i32, %c0_i32_0 : i32, i32
  }
  func.func @transform_5(%arg0: i32, %arg1: i32, %arg2: memref<1xi32, #tpu.memory_space<smem>>) -> (i32, i32) {
    %c0_i32 = arith.constant 0 : i32
    %c0_i32_0 = arith.constant 0 : i32
    %c0_i32_1 = arith.constant 0 : i32
    return %c0_i32, %c0_i32_0 : i32, i32
  }
  func.func @transform_6(%arg0: i32, %arg1: i32, %arg2: memref<1xi32, #tpu.memory_space<smem>>) -> (i32, i32) {
    %c0_i32 = arith.constant 0 : i32
    %c0_i32_0 = arith.constant 0 : i32
    %c0_i32_1 = arith.constant 0 : i32
    return %c0_i32, %c0_i32_0 : i32, i32
  }
  func.func @transform_7(%arg0: i32, %arg1: i32, %arg2: memref<1xi32, #tpu.memory_space<smem>>) -> (i32, i32) {
    %c0_i32 = arith.constant 0 : i32
    %c0_i32_0 = arith.constant 0 : i32
    %c0_i32_1 = arith.constant 0 : i32
    return %c0_i32, %c0_i32_0 : i32, i32
  }
  func.func @transform_8(%arg0: i32, %arg1: i32, %arg2: memref<1xi32, #tpu.memory_space<smem>>) -> (i32, i32) {
    %c0_i32 = arith.constant 0 : i32
    %c0_i32_0 = arith.constant 0 : i32
    %c0_i32_1 = arith.constant 0 : i32
    return %c0_i32, %c0_i32_0 : i32, i32
  }
  func.func @transform_9(%arg0: i32, %arg1: i32, %arg2: memref<1xi32, #tpu.memory_space<smem>>) -> (i32, i32) {
    %c0_i32 = arith.constant 0 : i32
    %c0_i32_0 = arith.constant 0 : i32
    %c0_i32_1 = arith.constant 0 : i32
    return %c0_i32, %c0_i32_0 : i32, i32
  }
}

</mosaic_0001>

<llo_original>
// kernel: tpu_custom_call.1
$region0: #{tpu_custom_call.1}
  #allocation0 [shape = 'u32[]', space=smem, size = 0x4, offset = 0x4, fixed_abs, tag = 'smem constant byte address 0x4 - core index']
  #allocation1 [shape = 'u32[72,128]{1,0:T(1,128)}', space=vmem, size = 0x9000, scoped, tag = 'internal scratch']
  #allocation2 [shape = 'f32[256,128]{1,0:T(8,128)}', space=vmem, size = 0x20000, scoped, tag = 'scratch operand']
  #allocation3 [shape = 'f32[8,128]{1,0:T(8,128)}', space=vmem, size = 0x1000, scoped, tag = 'scratch operand']
  #allocation4 [shape = 'f32[1,128]{1,0:T(1,128)}', space=vmem, size = 0x200, scoped, tag = 'scratch operand']
  #allocation5 [shape = 's32[1]{0}', space=sflag, size = 0x4, scoped, tag = 'scoped memory for tpu_custom_call.1']
  #allocation6 [shape = 's32[1]{0:T(128)S(6)}', space=smem, size = 0x200, scoped, tag = 'prefetched SMEM operand 0']
  %s0 = inlined_call_operand.<no memory space> [shape: s32[1], index: 0, kind: input, shape index: {}]
  %s1 = inlined_call_operand.hbm [shape: bf16[256,256], index: 1, kind: input, shape index: {}]
  %s2 = inlined_call_operand.hbm [shape: bf16[256,128], index: 2, kind: input, shape index: {}]
  %s3 = inlined_call_operand.vmem [shape: bf16[8,256], index: 3, kind: input, shape index: {}]
  %s4 = inlined_call_operand.vmem [shape: f32[1,128], index: 4, kind: input, shape index: {}]
  %s5 = inlined_call_operand.vmem [shape: f32[1,128], index: 5, kind: input, shape index: {}]
  %s6 = inlined_call_operand.vmem [shape: f32[8,1], index: 6, kind: input, shape index: {}]
  %s7 = inlined_call_operand.hbm [shape: f32[8,128], index: 7, kind: input, shape index: {}]
  %s8 = inlined_call_operand.hbm [shape: f32[128,128], index: 8, kind: input, shape index: {}]
  %s9 = inlined_call_operand.vmem [shape: f32[1,128], index: 9, kind: input, shape index: {}]
  %s10 = inlined_call_operand.hbm [shape: f32[8,128], index: 10, kind: output, shape index: {}]
  %s11 = sld [smem:[#allocation0]]
  $region78: #{tpu_custom_call.1} parent=0
    _
  %s13 = ssub.s32 1, %s11
  %s14 = scalar_select 0, %s13, %s11
  %15 = sst [smem:[#allocation6]] %s0
  $region1: #{tpu_custom_call.1} parent=0
    #allocation7 [shape = 'u8[131072]{0}', space=vmem, size = 0x20000, scoped, tag = 'input window, operand 1, single buffered']
    #allocation8 [shape = 's32[1]{0}', space=sflag, size = 0x4, scoped, tag = 'scoped memory for tpu_custom_call.1']
    #allocation9 [shape = 's32[1]{0}', space=sflag, size = 0x4, scoped, tag = 'scoped memory for tpu_custom_call.1']
    #allocation10 [shape = 'u8[65536]{0}', space=vmem, size = 0x10000, scoped, tag = 'input window, operand 2, single buffered']
    #allocation11 [shape = 's32[1]{0}', space=sflag, size = 0x4, scoped, tag = 'scoped memory for tpu_custom_call.1']
    #allocation12 [shape = 'u8[4096]{0}', space=vmem, size = 0x1000, scoped, tag = 'input window, operand 7, single buffered']
    #allocation13 [shape = 'u8[65536]{0}', space=vmem, size = 0x10000, scoped, tag = 'input window, operand 8, single buffered']
    #allocation14 [shape = 's32[1]{0}', space=sflag, size = 0x4, scoped, tag = 'scoped memory for tpu_custom_call.1']
    #allocation15 [shape = 'u8[4096]{0}', space=vmem, size = 0x1000, scoped, tag = 'output window, operand 0, single buffered']
    %16 = vsyncpa [#allocation8], 0
    %17 = vsyncpa [#allocation11], 0
    %18 = vsyncpa [#allocation14], 0
    %19 = vsyncpa [#allocation9], 0
    // Predicated region
    $region2: #{tpu_custom_call.1} parent=1 // pred_check
      _
    $region3: #{tpu_custom_call.1} parent=1 // pred_check_branch
      %21 = sbr.rel (0) target = $region5
    $region4: #{tpu_custom_call.1} parent=1 // pred_region
      %23 = vsyncadd [#allocation8], 0
      %s24 = sshll.u32 %s1, 4
      %s25 = int_to_ptr.hbm [resolvable:$true] %s24
      %s26 = sshll.u32 [#allocation7], 4
      %s27 = int_to_ptr.vmem [resolvable:$true] %s26
      %32 = dma.hbm_to_vmem [thread:$0]  %s25, 4096, %s27, [#allocation8], 128, 128, 8
    $region5: #{tpu_custom_call.1} parent=1 // pred_fallthru
      _
    // Predicated region
    $region6: #{tpu_custom_call.1} parent=1 // pred_check
      _
    $region7: #{tpu_custom_call.1} parent=1 // pred_check_branch
      %34 = sbr.rel (0) target = $region9
    $region8: #{tpu_custom_call.1} parent=1 // pred_region
      %36 = vsyncadd [#allocation11], 0
      %s37 = sshll.u32 %s2, 4
      %s38 = int_to_ptr.hbm [resolvable:$true] %s37
      %s39 = sshll.u32 [#allocation10], 4
      %s40 = int_to_ptr.vmem [resolvable:$true] %s39
      %45 = dma.hbm_to_vmem [thread:$0]  %s38, 2048, %s40, [#allocation11], 64, 64, 4
    $region9: #{tpu_custom_call.1} parent=1 // pred_fallthru
      _
    // Predicated region
    $region10: #{tpu_custom_call.1} parent=1 // pred_check
      _
    $region11: #{tpu_custom_call.1} parent=1 // pred_check_branch
      %47 = sbr.rel (0) target = $region13
    $region12: #{tpu_custom_call.1} parent=1 // pred_region
      _
    $region13: #{tpu_custom_call.1} parent=1 // pred_fallthru
      _
    // Predicated region
    $region14: #{tpu_custom_call.1} parent=1 // pred_check
      _
    $region15: #{tpu_custom_call.1} parent=1 // pred_check_branch
      %49 = sbr.rel (0) target = $region17
    $region16: #{tpu_custom_call.1} parent=1 // pred_region
      _
    $region17: #{tpu_custom_call.1} parent=1 // pred_fallthru
      _
    // Predicated region
    $region18: #{tpu_custom_call.1} parent=1 // pred_check
      _
    $region19: #{tpu_custom_call.1} parent=1 // pred_check_branch
      %51 = sbr.rel (0) target = $region21
    $region20: #{tpu_custom_call.1} parent=1 // pred_region
      _
    $region21: #{tpu_custom_call.1} parent=1 // pred_fallthru
      _
    // Predicated region
    $region22: #{tpu_custom_call.1} parent=1 // pred_check
      _
    $region23: #{tpu_custom_call.1} parent=1 // pred_check_branch
      %53 = sbr.rel (0) target = $region25
    $region24: #{tpu_custom_call.1} parent=1 // pred_region
      _
    $region25: #{tpu_custom_call.1} parent=1 // pred_fallthru
      _
    // Predicated region
    $region26: #{tpu_custom_call.1} parent=1 // pred_check
      _
    $region27: #{tpu_custom_call.1} parent=1 // pred_check_branch
      %55 = sbr.rel (0) target = $region29
    $region28: #{tpu_custom_call.1} parent=1 // pred_region
      %57 = vsyncadd [#allocation11], 0
      %s59 = sshll.u32 %s7, 4
      %s60 = int_to_ptr.hbm [resolvable:$true] %s59
      %s61 = sshll.u32 [#allocation12], 4
      %s62 = int_to_ptr.vmem [resolvable:$true] %s61
      %64 = dma.hbm_to_vmem [thread:$0]  %s60, 128, %s62, [#allocation11]
    $region29: #{tpu_custom_call.1} parent=1 // pred_fallthru
      _
    // Predicated region
    $region30: #{tpu_custom_call.1} parent=1 // pred_check
      _
    $region31: #{tpu_custom_call.1} parent=1 // pred_check_branch
      %66 = sbr.rel (0) target = $region33
    $region32: #{tpu_custom_call.1} parent=1 // pred_region
      %68 = vsyncadd [#allocation14], 0
      %s69 = sshll.u32 %s8, 4
      %s70 = int_to_ptr.hbm [resolvable:$true] %s69
      %s71 = sshll.u32 [#allocation13], 4
      %s72 = int_to_ptr.vmem [resolvable:$true] %s71
      %77 = dma.hbm_to_vmem [thread:$0]  %s70, 2048, %s72, [#allocation14], 128, 128, 8
    $region33: #{tpu_custom_call.1} parent=1 // pred_fallthru
      _
    // Predicated region
    $region34: #{tpu_custom_call.1} parent=1 // pred_check
      _
    $region35: #{tpu_custom_call.1} parent=1 // pred_check_branch
      %79 = sbr.rel (0) target = $region37
    $region36: #{tpu_custom_call.1} parent=1 // pred_region
      _
    $region37: #{tpu_custom_call.1} parent=1 // pred_fallthru
      _
    // Predicated region
    $region38: #{tpu_custom_call.1} parent=1 // pred_check
      _
    $region39: #{tpu_custom_call.1} parent=1 // pred_check_branch
      %81 = sbr.rel (0) target = $region41
    $region40: #{tpu_custom_call.1} parent=1 // pred_region
      %83 = dma.done [#allocation8], 4096
    $region41: #{tpu_custom_call.1} parent=1 // pred_fallthru
      _
    // Predicated region
    $region42: #{tpu_custom_call.1} parent=1 // pred_check
      _
    $region43: #{tpu_custom_call.1} parent=1 // pred_check_branch
      %85 = sbr.rel (0) target = $region45
    $region44: #{tpu_custom_call.1} parent=1 // pred_region
      %87 = dma.done [#allocation11], 2048
    $region45: #{tpu_custom_call.1} parent=1 // pred_fallthru
      _
    // Predicated region
    $region46: #{tpu_custom_call.1} parent=1 // pred_check
      _
    $region47: #{tpu_custom_call.1} parent=1 // pred_check_branch
      %89 = sbr.rel (0) target = $region49
    $region48: #{tpu_custom_call.1} parent=1 // pred_region
      %91 = dma.done [#allocation11], 128
    $region49: #{tpu_custom_call.1} parent=1 // pred_fallthru
      _
    // Predicated region
    $region50: #{tpu_custom_call.1} parent=1 // pred_check
      _
    $region51: #{tpu_custom_call.1} parent=1 // pred_check_branch
      %93 = sbr.rel (0) target = $region53
    $region52: #{tpu_custom_call.1} parent=1 // pred_region
      %95 = dma.done [#allocation14], 2048
    $region53: #{tpu_custom_call.1} parent=1 // pred_fallthru
      _
    %p96 = scmp.eq.s32.totalorder 0, 0
    %p97 = scmp.eq.s32.totalorder 0, 0
    %p98 = pnand %p96, %p97
    %p99 = pneg %p98
    // Predicated region
    $region54: #{tpu_custom_call.1} parent=1 // pred_check
      _
    $region55: #{tpu_custom_call.1} parent=1 // pred_check_branch
      %101 = sbr.rel (%p98) target = $region57
    $region56: #{tpu_custom_call.1} parent=1 // pred_region
      %102 = vst [vmem:[#allocation3] sm:$0xff] 0.0
      %103 = vst [vmem:[#allocation4] sm:$0x1] 0.0
    $region57: #{tpu_custom_call.1} parent=1 // pred_fallthru
      _
    // Predicated region
    $region58: #{tpu_custom_call.1} parent=1 // pred_check
      %p104 = pneg %p97
    $region59: #{tpu_custom_call.1} parent=1 // pred_check_branch
      %106 = sbr.rel (%p104) target = $region61
    $region60: #{tpu_custom_call.1} parent=1 // pred_region
      %107 = vst [vmem:[#allocation2] sm:$0xff] 0.0
      %108 = vst [vmem:[#allocation2 + $0x8] sm:$0xff] 0.0
      %109 = vst [vmem:[#allocation2 + $0x10] sm:$0xff] 0.0
      %110 = vst [vmem:[#allocation2 + $0x18] sm:$0xff] 0.0
      %111 = vst [vmem:[#allocation2 + $0x20] sm:$0xff] 0.0
      %112 = vst [vmem:[#allocation2 + $0x28] sm:$0xff] 0.0
      %113 = vst [vmem:[#allocation2 + $0x30] sm:$0xff] 0.0
      %114 = vst [vmem:[#allocation2 + $0x38] sm:$0xff] 0.0
      %115 = vst [vmem:[#allocation2 + $0x40] sm:$0xff] 0.0
      %116 = vst [vmem:[#allocation2 + $0x48] sm:$0xff] 0.0
      %117 = vst [vmem:[#allocation2 + $0x50] sm:$0xff] 0.0
      %118 = vst [vmem:[#allocation2 + $0x58] sm:$0xff] 0.0
      %119 = vst [vmem:[#allocation2 + $0x60] sm:$0xff] 0.0
      %120 = vst [vmem:[#allocation2 + $0x68] sm:$0xff] 0.0
      %121 = vst [vmem:[#allocation2 + $0x70] sm:$0xff] 0.0
      %122 = vst [vmem:[#allocation2 + $0x78] sm:$0xff] 0.0
      %123 = vst [vmem:[#allocation2 + $0x80] sm:$0xff] 0.0
      %124 = vst [vmem:[#allocation2 + $0x88] sm:$0xff] 0.0
      %125 = vst [vmem:[#allocation2 + $0x90] sm:$0xff] 0.0
      %126 = vst [vmem:[#allocation2 + $0x98] sm:$0xff] 0.0
      %127 = vst [vmem:[#allocation2 + $0xa0] sm:$0xff] 0.0
      %128 = vst [vmem:[#allocation2 + $0xa8] sm:$0xff] 0.0
      %129 = vst [vmem:[#allocation2 + $0xb0] sm:$0xff] 0.0
      %130 = vst [vmem:[#allocation2 + $0xb8] sm:$0xff] 0.0
      %131 = vst [vmem:[#allocation2 + $0xc0] sm:$0xff] 0.0
      %132 = vst [vmem:[#allocation2 + $0xc8] sm:$0xff] 0.0
      %133 = vst [vmem:[#allocation2 + $0xd0] sm:$0xff] 0.0
      %134 = vst [vmem:[#allocation2 + $0xd8] sm:$0xff] 0.0
      %135 = vst [vmem:[#allocation2 + $0xe0] sm:$0xff] 0.0
      %136 = vst [vmem:[#allocation2 + $0xe8] sm:$0xff] 0.0
      %137 = vst [vmem:[#allocation2 + $0xf0] sm:$0xff] 0.0
      %138 = vst [vmem:[#allocation2 + $0xf8] sm:$0xff] 0.0
    $region61: #{tpu_custom_call.1} parent=1 // pred_fallthru
      _
    %v139 = vld [vmem:[#allocation2] sm:$0xff]
    %v140 = vld [vmem:[#allocation2 + $0x8] sm:$0xff]
    %v141 = vld [vmem:[#allocation2 + $0x10] sm:$0xff]
    %v142 = vld [vmem:[#allocation2 + $0x18] sm:$0xff]
    %v143 = vld [vmem:[#allocation2 + $0x20] sm:$0xff]
    %v144 = vld [vmem:[#allocation2 + $0x28] sm:$0xff]
    %v145 = vld [vmem:[#allocation2 + $0x30] sm:$0xff]
    %v146 = vld [vmem:[#allocation2 + $0x38] sm:$0xff]
    %v147 = vld [vmem:[#allocation2 + $0x40] sm:$0xff]
    %v148 = vld [vmem:[#allocation2 + $0x48] sm:$0xff]
    %v149 = vld [vmem:[#allocation2 + $0x50] sm:$0xff]
    %v150 = vld [vmem:[#allocation2 + $0x58] sm:$0xff]
    %v151 = vld [vmem:[#allocation2 + $0x60] sm:$0xff]
    %v152 = vld [vmem:[#allocation2 + $0x68] sm:$0xff]
    %v153 = vld [vmem:[#allocation2 + $0x70] sm:$0xff]
    %v154 = vld [vmem:[#allocation2 + $0x78] sm:$0xff]
    %v155 = vld [vmem:[#allocation2 + $0x80] sm:$0xff]
    %v156 = vld [vmem:[#allocation2 + $0x88] sm:$0xff]
    %v157 = vld [vmem:[#allocation2 + $0x90] sm:$0xff]
    %v158 = vld [vmem:[#allocation2 + $0x98] sm:$0xff]
    %v159 = vld [vmem:[#allocation2 + $0xa0] sm:$0xff]
    %v160 = vld [vmem:[#allocation2 + $0xa8] sm:$0xff]
    %v161 = vld [vmem:[#allocation2 + $0xb0] sm:$0xff]
    %v162 = vld [vmem:[#allocation2 + $0xb8] sm:$0xff]
    %v163 = vld [vmem:[#allocation2 + $0xc0] sm:$0xff]
    %v164 = vld [vmem:[#allocation2 + $0xc8] sm:$0xff]
    %v165 = vld [vmem:[#allocation2 + $0xd0] sm:$0xff]
    %v166 = vld [vmem:[#allocation2 + $0xd8] sm:$0xff]
    %v167 = vld [vmem:[#allocation2 + $0xe0] sm:$0xff]
    %v168 = vld [vmem:[#allocation2 + $0xe8] sm:$0xff]
    %v169 = vld [vmem:[#allocation2 + $0xf0] sm:$0xff]
    %v170 = vld [vmem:[#allocation2 + $0xf8] sm:$0xff]
    %v171 = vld [vmem:[#allocation7] sm:$0xff]
    %v172 = vld [vmem:[#allocation7 + $0x8] sm:$0xff]
    %v173 = vld [vmem:[#allocation7 + $0x10] sm:$0xff]
    %v174 = vld [vmem:[#allocation7 + $0x18] sm:$0xff]
    %v175 = vld [vmem:[#allocation7 + $0x20] sm:$0xff]
    %v176 = vld [vmem:[#allocation7 + $0x28] sm:$0xff]
    %v177 = vld [vmem:[#allocation7 + $0x30] sm:$0xff]
    %v178 = vld [vmem:[#allocation7 + $0x38] sm:$0xff]
    %v179 = vld [vmem:[#allocation7 + $0x40] sm:$0xff]
    %v180 = vld [vmem:[#allocation7 + $0x48] sm:$0xff]
    %v181 = vld [vmem:[#allocation7 + $0x50] sm:$0xff]
    %v182 = vld [vmem:[#allocation7 + $0x58] sm:$0xff]
    %v183 = vld [vmem:[#allocation7 + $0x60] sm:$0xff]
    %v184 = vld [vmem:[#allocation7 + $0x68] sm:$0xff]
    %v185 = vld [vmem:[#allocation7 + $0x70] sm:$0xff]
    %v186 = vld [vmem:[#allocation7 + $0x78] sm:$0xff]
    %v187 = vld [vmem:[#allocation7 + $0x80] sm:$0xff]
    %v188 = vld [vmem:[#allocation7 + $0x88] sm:$0xff]
    %v189 = vld [vmem:[#allocation7 + $0x90] sm:$0xff]
    %v190 = vld [vmem:[#allocation7 + $0x98] sm:$0xff]
    %v191 = vld [vmem:[#allocation7 + $0xa0] sm:$0xff]
    %v192 = vld [vmem:[#allocation7 + $0xa8] sm:$0xff]
    %v193 = vld [vmem:[#allocation7 + $0xb0] sm:$0xff]
    %v194 = vld [vmem:[#allocation7 + $0xb8] sm:$0xff]
    %v195 = vld [vmem:[#allocation7 + $0xc0] sm:$0xff]
    %v196 = vld [vmem:[#allocation7 + $0xc8] sm:$0xff]
    %v197 = vld [vmem:[#allocation7 + $0xd0] sm:$0xff]
    %v198 = vld [vmem:[#allocation7 + $0xd8] sm:$0xff]
    %v199 = vld [vmem:[#allocation7 + $0xe0] sm:$0xff]
    %v200 = vld [vmem:[#allocation7 + $0xe8] sm:$0xff]
    %v201 = vld [vmem:[#allocation7 + $0xf0] sm:$0xff]
    %v202 = vld [vmem:[#allocation7 + $0xf8] sm:$0xff]
    %v203 = vld [vmem:[#allocation10] sm:$0xf]
    %v204 = vld [vmem:[#allocation10 + $0x4] sm:$0xf]
    %v205 = vld [vmem:[#allocation10 + $0x8] sm:$0xf]
    %v206 = vld [vmem:[#allocation10 + $0xc] sm:$0xf]
    %v207 = vld [vmem:[#allocation10 + $0x10] sm:$0xf]
    %v208 = vld [vmem:[#allocation10 + $0x14] sm:$0xf]
    %v209 = vld [vmem:[#allocation10 + $0x18] sm:$0xf]
    %v210 = vld [vmem:[#allocation10 + $0x1c] sm:$0xf]
    %v211 = vld [vmem:[#allocation10 + $0x20] sm:$0xf]
    %v212 = vld [vmem:[#allocation10 + $0x24] sm:$0xf]
    %v213 = vld [vmem:[#allocation10 + $0x28] sm:$0xf]
    %v214 = vld [vmem:[#allocation10 + $0x2c] sm:$0xf]
    %v215 = vld [vmem:[#allocation10 + $0x30] sm:$0xf]
    %v216 = vld [vmem:[#allocation10 + $0x34] sm:$0xf]
    %v217 = vld [vmem:[#allocation10 + $0x38] sm:$0xf]
    %v218 = vld [vmem:[#allocation10 + $0x3c] sm:$0xf]
    %v219 = vld [vmem:[#allocation10 + $0x40] sm:$0xf]
    %v220 = vld [vmem:[#allocation10 + $0x44] sm:$0xf]
    %v221 = vld [vmem:[#allocation10 + $0x48] sm:$0xf]
    %v222 = vld [vmem:[#allocation10 + $0x4c] sm:$0xf]
    %v223 = vld [vmem:[#allocation10 + $0x50] sm:$0xf]
    %v224 = vld [vmem:[#allocation10 + $0x54] sm:$0xf]
    %v225 = vld [vmem:[#allocation10 + $0x58] sm:$0xf]
    %v226 = vld [vmem:[#allocation10 + $0x5c] sm:$0xf]
    %v227 = vld [vmem:[#allocation10 + $0x60] sm:$0xf]
    %v228 = vld [vmem:[#allocation10 + $0x64] sm:$0xf]
    %v229 = vld [vmem:[#allocation10 + $0x68] sm:$0xf]
    %v230 = vld [vmem:[#allocation10 + $0x6c] sm:$0xf]
    %v231 = vld [vmem:[#allocation10 + $0x70] sm:$0xf]
    %v232 = vld [vmem:[#allocation10 + $0x74] sm:$0xf]
    %v233 = vld [vmem:[#allocation10 + $0x78] sm:$0xf]
    %v234 = vld [vmem:[#allocation10 + $0x7c] sm:$0xf]
    %v267 = vunpack.c.l.b16 %v171
    %v268 = vunpack.c.h.b16 %v171
    %v269 = vunpack.c.l.b16 %v172
    %v270 = vunpack.c.h.b16 %v172
    %v271 = vunpack.c.l.b16 %v173
    %v272 = vunpack.c.h.b16 %v173
    %v273 = vunpack.c.l.b16 %v174
    %v274 = vunpack.c.h.b16 %v174
    %v275 = vunpack.c.l.b16 %v175
    %v276 = vunpack.c.h.b16 %v175
    %v277 = vunpack.c.l.b16 %v176
    %v278 = vunpack.c.h.b16 %v176
    %v279 = vunpack.c.l.b16 %v177
    %v280 = vunpack.c.h.b16 %v177
    %v281 = vunpack.c.l.b16 %v178
    %v282 = vunpack.c.h.b16 %v178
    %v283 = vunpack.c.l.b16 %v179
    %v284 = vunpack.c.h.b16 %v179
    %v285 = vunpack.c.l.b16 %v180
    %v286 = vunpack.c.h.b16 %v180
    %v287 = vunpack.c.l.b16 %v181
    %v288 = vunpack.c.h.b16 %v181
    %v289 = vunpack.c.l.b16 %v182
    %v290 = vunpack.c.h.b16 %v182
    %v291 = vunpack.c.l.b16 %v183
    %v292 = vunpack.c.h.b16 %v183
    %v293 = vunpack.c.l.b16 %v184
    %v294 = vunpack.c.h.b16 %v184
    %v295 = vunpack.c.l.b16 %v185
    %v296 = vunpack.c.h.b16 %v185
    %v297 = vunpack.c.l.b16 %v186
    %v298 = vunpack.c.h.b16 %v186
    %v299 = vunpack.c.l.b16 %v187
    %v300 = vunpack.c.h.b16 %v187
    %v301 = vunpack.c.l.b16 %v188
    %v302 = vunpack.c.h.b16 %v188
    %v303 = vunpack.c.l.b16 %v189
    %v304 = vunpack.c.h.b16 %v189
    %v305 = vunpack.c.l.b16 %v190
    %v306 = vunpack.c.h.b16 %v190
    %v307 = vunpack.c.l.b16 %v191
    %v308 = vunpack.c.h.b16 %v191
    %v309 = vunpack.c.l.b16 %v192
    %v310 = vunpack.c.h.b16 %v192
    %v311 = vunpack.c.l.b16 %v193
    %v312 = vunpack.c.h.b16 %v193
    %v313 = vunpack.c.l.b16 %v194
    %v314 = vunpack.c.h.b16 %v194
    %v315 = vunpack.c.l.b16 %v195
    %v316 = vunpack.c.h.b16 %v195
    %v317 = vunpack.c.l.b16 %v196
    %v318 = vunpack.c.h.b16 %v196
    %v319 = vunpack.c.l.b16 %v197
    %v320 = vunpack.c.h.b16 %v197
    %v321 = vunpack.c.l.b16 %v198
    %v322 = vunpack.c.h.b16 %v198
    %v323 = vunpack.c.l.b16 %v199
    %v324 = vunpack.c.h.b16 %v199
    %v325 = vunpack.c.l.b16 %v200
    %v326 = vunpack.c.h.b16 %v200
    %v327 = vunpack.c.l.b16 %v201
    %v328 = vunpack.c.h.b16 %v201
    %v329 = vunpack.c.l.b16 %v202
    %v330 = vunpack.c.h.b16 %v202
    %v331 = vpack.c.b16 %v269, %v267
    %v332 = vpack.c.b16 %v270, %v268
    %v333 = vpack.c.b16 %v273, %v271
    %v334 = vpack.c.b16 %v274, %v272
    %v335 = vpack.c.b16 %v277, %v275
    %v336 = vpack.c.b16 %v278, %v276
    %v337 = vpack.c.b16 %v281, %v279
    %v338 = vpack.c.b16 %v282, %v280
    %v339 = vpack.c.b16 %v285, %v283
    %v340 = vpack.c.b16 %v286, %v284
    %v341 = vpack.c.b16 %v289, %v287
    %v342 = vpack.c.b16 %v290, %v288
    %v343 = vpack.c.b16 %v293, %v291
    %v344 = vpack.c.b16 %v294, %v292
    %v345 = vpack.c.b16 %v297, %v295
    %v346 = vpack.c.b16 %v298, %v296
    %v347 = vpack.c.b16 %v301, %v299
    %v348 = vpack.c.b16 %v302, %v300
    %v349 = vpack.c.b16 %v305, %v303
    %v350 = vpack.c.b16 %v306, %v304
    %v351 = vpack.c.b16 %v309, %v307
    %v352 = vpack.c.b16 %v310, %v308
    %v353 = vpack.c.b16 %v313, %v311
    %v354 = vpack.c.b16 %v314, %v312
    %v355 = vpack.c.b16 %v317, %v315
    %v356 = vpack.c.b16 %v318, %v316
    %v357 = vpack.c.b16 %v321, %v319
    %v358 = vpack.c.b16 %v322, %v320
    %v359 = vpack.c.b16 %v325, %v323
    %v360 = vpack.c.b16 %v326, %v324
    %v361 = vpack.c.b16 %v329, %v327
    %v362 = vpack.c.b16 %v330, %v328
    %v427 = vunpack.c.l.b16 %v203
    %v428 = vunpack.c.l.b16 %v204
    %v429 = vunpack.c.l.b16 %v205
    %v430 = vunpack.c.l.b16 %v206
    %v431 = vunpack.c.l.b16 %v207
    %v432 = vunpack.c.l.b16 %v208
    %v433 = vunpack.c.l.b16 %v209
    %v434 = vunpack.c.l.b16 %v210
    %v435 = vunpack.c.l.b16 %v211
    %v436 = vunpack.c.l.b16 %v212
    %v437 = vunpack.c.l.b16 %v213
    %v438 = vunpack.c.l.b16 %v214
    %v439 = vunpack.c.l.b16 %v215
    %v440 = vunpack.c.l.b16 %v216
    %v441 = vunpack.c.l.b16 %v217
    %v442 = vunpack.c.l.b16 %v218
    %v443 = vunpack.c.l.b16 %v219
    %v444 = vunpack.c.l.b16 %v220
    %v445 = vunpack.c.l.b16 %v221
    %v446 = vunpack.c.l.b16 %v222
    %v447 = vunpack.c.l.b16 %v223
    %v448 = vunpack.c.l.b16 %v224
    %v449 = vunpack.c.l.b16 %v225
    %v450 = vunpack.c.l.b16 %v226
    %v451 = vunpack.c.l.b16 %v227
    %v452 = vunpack.c.l.b16 %v228
    %v453 = vunpack.c.l.b16 %v229
    %v454 = vunpack.c.l.b16 %v230
    %v455 = vunpack.c.l.b16 %v231
    %v456 = vunpack.c.l.b16 %v232
    %v457 = vunpack.c.l.b16 %v233
    %v458 = vunpack.c.l.b16 %v234
    %v459 = vpack.c.b16 %v428, %v427
    %v460 = vpack.c.b16 %v430, %v429
    %v461 = vpack.c.b16 %v432, %v431
    %v462 = vpack.c.b16 %v434, %v433
    %v463 = vpack.c.b16 %v436, %v435
    %v464 = vpack.c.b16 %v438, %v437
    %v465 = vpack.c.b16 %v440, %v439
    %v466 = vpack.c.b16 %v442, %v441
    %v467 = vpack.c.b16 %v444, %v443
    %v468 = vpack.c.b16 %v446, %v445
    %v469 = vpack.c.b16 %v448, %v447
    %v470 = vpack.c.b16 %v450, %v449
    %v471 = vpack.c.b16 %v452, %v451
    %v472 = vpack.c.b16 %v454, %v453
    %v473 = vpack.c.b16 %v456, %v455
    %v474 = vpack.c.b16 %v458, %v457
    %491 = vmatpush.bf16.msra.mxu0 %v466
    %492 = vmatpush.bf16.msra.mxu0 %v465
    %493 = vmatpush.bf16.msra.mxu0 %v464
    %494 = vmatpush.bf16.msra.mxu0 %v463
    %495 = vmatpush.bf16.msra.mxu0 %v462
    %496 = vmatpush.bf16.msra.mxu0 %v461
    %497 = vmatpush.bf16.msra.mxu0 %v460
    %498 = vmatpush.bf16.msra.mxu0 %v459
    %499 = vmatmul.bf16.gmra.mxu0 %v331
    %v500 = vpop.f32.mrf.mxu0
    %v501 = vadd.f32 0.0, %v500
    %v502 = vpop.f32.mrf.mxu0
    %v503 = vadd.f32 0.0, %v502
    %504 = vmatmul.bf16.gmra.mxu0 %v333
    %v505 = vpop.f32.mrf.mxu0
    %v506 = vadd.f32 0.0, %v505
    %v507 = vpop.f32.mrf.mxu0
    %v508 = vadd.f32 0.0, %v507
    %509 = vmatmul.bf16.gmra.mxu0 %v335
    %v510 = vpop.f32.mrf.mxu0
    %v511 = vadd.f32 0.0, %v510
    %v512 = vpop.f32.mrf.mxu0
    %v513 = vadd.f32 0.0, %v512
    %514 = vmatmul.bf16.gmra.mxu0 %v337
    %v515 = vpop.f32.mrf.mxu0
    %v516 = vadd.f32 0.0, %v515
    %v517 = vpop.f32.mrf.mxu0
    %v518 = vadd.f32 0.0, %v517
    %519 = vmatmul.bf16.gmra.mxu0 %v339
    %v520 = vpop.f32.mrf.mxu0
    %v521 = vadd.f32 0.0, %v520
    %v522 = vpop.f32.mrf.mxu0
    %v523 = vadd.f32 0.0, %v522
    %524 = vmatmul.bf16.gmra.mxu0 %v341
    %v525 = vpop.f32.mrf.mxu0
    %v526 = vadd.f32 0.0, %v525
    %v527 = vpop.f32.mrf.mxu0
    %v528 = vadd.f32 0.0, %v527
    %529 = vmatmul.bf16.gmra.mxu0 %v343
    %v530 = vpop.f32.mrf.mxu0
    %v531 = vadd.f32 0.0, %v530
    %v532 = vpop.f32.mrf.mxu0
    %v533 = vadd.f32 0.0, %v532
    %534 = vmatmul.bf16.gmra.mxu0 %v345
    %v535 = vpop.f32.mrf.mxu0
    %v536 = vadd.f32 0.0, %v535
    %v537 = vpop.f32.mrf.mxu0
    %v538 = vadd.f32 0.0, %v537
    %539 = vmatmul.bf16.gmra.mxu0 %v347
    %v540 = vpop.f32.mrf.mxu0
    %v541 = vadd.f32 0.0, %v540
    %v542 = vpop.f32.mrf.mxu0
    %v543 = vadd.f32 0.0, %v542
    %544 = vmatmul.bf16.gmra.mxu0 %v349
    %v545 = vpop.f32.mrf.mxu0
    %v546 = vadd.f32 0.0, %v545
    %v547 = vpop.f32.mrf.mxu0
    %v548 = vadd.f32 0.0, %v547
    %549 = vmatmul.bf16.gmra.mxu0 %v351
    %v550 = vpop.f32.mrf.mxu0
    %v551 = vadd.f32 0.0, %v550
    %v552 = vpop.f32.mrf.mxu0
    %v553 = vadd.f32 0.0, %v552
    %554 = vmatmul.bf16.gmra.mxu0 %v353
    %v555 = vpop.f32.mrf.mxu0
    %v556 = vadd.f32 0.0, %v555
    %v557 = vpop.f32.mrf.mxu0
    %v558 = vadd.f32 0.0, %v557
    %559 = vmatmul.bf16.gmra.mxu0 %v355
    %v560 = vpop.f32.mrf.mxu0
    %v561 = vadd.f32 0.0, %v560
    %v562 = vpop.f32.mrf.mxu0
    %v563 = vadd.f32 0.0, %v562
    %564 = vmatmul.bf16.gmra.mxu0 %v357
    %v565 = vpop.f32.mrf.mxu0
    %v566 = vadd.f32 0.0, %v565
    %v567 = vpop.f32.mrf.mxu0
    %v568 = vadd.f32 0.0, %v567
    %569 = vmatmul.bf16.gmra.mxu0 %v359
    %v570 = vpop.f32.mrf.mxu0
    %v571 = vadd.f32 0.0, %v570
    %v572 = vpop.f32.mrf.mxu0
    %v573 = vadd.f32 0.0, %v572
    %574 = vmatmul.bf16.gmra.mxu0 %v361
    %v575 = vpop.f32.mrf.mxu0
    %v576 = vadd.f32 0.0, %v575
    %v577 = vpop.f32.mrf.mxu0
    %v578 = vadd.f32 0.0, %v577
    %579 = vdwg.mxu0
    %580 = vmatpush.bf16.msra.mxu0 %v474
    %581 = vmatpush.bf16.msra.mxu0 %v473
    %582 = vmatpush.bf16.msra.mxu0 %v472
    %583 = vmatpush.bf16.msra.mxu0 %v471
    %584 = vmatpush.bf16.msra.mxu0 %v470
    %585 = vmatpush.bf16.msra.mxu0 %v469
    %586 = vmatpush.bf16.msra.mxu0 %v468
    %587 = vmatpush.bf16.msra.mxu0 %v467
    %588 = vmatmul.bf16.gmra.mxu0 %v332
    %v589 = vpop.f32.mrf.mxu0
    %v590 = vadd.f32 %v501, %v589
    %v591 = vpop.f32.mrf.mxu0
    %v592 = vadd.f32 %v503, %v591
    %593 = vmatmul.bf16.gmra.mxu0 %v334
    %v594 = vpop.f32.mrf.mxu0
    %v595 = vadd.f32 %v506, %v594
    %v596 = vpop.f32.mrf.mxu0
    %v597 = vadd.f32 %v508, %v596
    %598 = vmatmul.bf16.gmra.mxu0 %v336
    %v599 = vpop.f32.mrf.mxu0
    %v600 = vadd.f32 %v511, %v599
    %v601 = vpop.f32.mrf.mxu0
    %v602 = vadd.f32 %v513, %v601
    %603 = vmatmul.bf16.gmra.mxu0 %v338
    %v604 = vpop.f32.mrf.mxu0
    %v605 = vadd.f32 %v516, %v604
    %v606 = vpop.f32.mrf.mxu0
    %v607 = vadd.f32 %v518, %v606
    %608 = vmatmul.bf16.gmra.mxu0 %v340
    %v609 = vpop.f32.mrf.mxu0
    %v610 = vadd.f32 %v521, %v609
    %v611 = vpop.f32.mrf.mxu0
    %v612 = vadd.f32 %v523, %v611
    %613 = vmatmul.bf16.gmra.mxu0 %v342
    %v614 = vpop.f32.mrf.mxu0
    %v615 = vadd.f32 %v526, %v614
    %v616 = vpop.f32.mrf.mxu0
    %v617 = vadd.f32 %v528, %v616
    %618 = vmatmul.bf16.gmra.mxu0 %v344
    %v619 = vpop.f32.mrf.mxu0
    %v620 = vadd.f32 %v531, %v619
    %v621 = vpop.f32.mrf.mxu0
    %v622 = vadd.f32 %v533, %v621
    %623 = vmatmul.bf16.gmra.mxu0 %v346
    %v624 = vpop.f32.mrf.mxu0
    %v625 = vadd.f32 %v536, %v624
    %v626 = vpop.f32.mrf.mxu0
    %v627 = vadd.f32 %v538, %v626
    %628 = vmatmul.bf16.gmra.mxu0 %v348
    %v629 = vpop.f32.mrf.mxu0
    %v630 = vadd.f32 %v541, %v629
    %v631 = vpop.f32.mrf.mxu0
    %v632 = vadd.f32 %v543, %v631
    %633 = vmatmul.bf16.gmra.mxu0 %v350
    %v634 = vpop.f32.mrf.mxu0
    %v635 = vadd.f32 %v546, %v634
    %v636 = vpop.f32.mrf.mxu0
    %v637 = vadd.f32 %v548, %v636
    %638 = vmatmul.bf16.gmra.mxu0 %v352
    %v639 = vpop.f32.mrf.mxu0
    %v640 = vadd.f32 %v551, %v639
    %v641 = vpop.f32.mrf.mxu0
    %v642 = vadd.f32 %v553, %v641
    %643 = vmatmul.bf16.gmra.mxu0 %v354
    %v644 = vpop.f32.mrf.mxu0
    %v645 = vadd.f32 %v556, %v644
    %v646 = vpop.f32.mrf.mxu0
    %v647 = vadd.f32 %v558, %v646
    %648 = vmatmul.bf16.gmra.mxu0 %v356
    %v649 = vpop.f32.mrf.mxu0
    %v650 = vadd.f32 %v561, %v649
    %v651 = vpop.f32.mrf.mxu0
    %v652 = vadd.f32 %v563, %v651
    %653 = vmatmul.bf16.gmra.mxu0 %v358
    %v654 = vpop.f32.mrf.mxu0
    %v655 = vadd.f32 %v566, %v654
    %v656 = vpop.f32.mrf.mxu0
    %v657 = vadd.f32 %v568, %v656
    %658 = vmatmul.bf16.gmra.mxu0 %v360
    %v659 = vpop.f32.mrf.mxu0
    %v660 = vadd.f32 %v571, %v659
    %v661 = vpop.f32.mrf.mxu0
    %v662 = vadd.f32 %v573, %v661
    %663 = vmatmul.bf16.gmra.mxu0 %v362
    %v664 = vpop.f32.mrf.mxu0
    %v665 = vadd.f32 %v576, %v664
    %v666 = vpop.f32.mrf.mxu0
    %v667 = vadd.f32 %v578, %v666
    %668 = vdwg.mxu0
    %v669 = vadd.f32 %v139, %v590
    %v670 = vadd.f32 %v140, %v592
    %v671 = vadd.f32 %v141, %v595
    %v672 = vadd.f32 %v142, %v597
    %v673 = vadd.f32 %v143, %v600
    %v674 = vadd.f32 %v144, %v602
    %v675 = vadd.f32 %v145, %v605
    %v676 = vadd.f32 %v146, %v607
    %v677 = vadd.f32 %v147, %v610
    %v678 = vadd.f32 %v148, %v612
    %v679 = vadd.f32 %v149, %v615
    %v680 = vadd.f32 %v150, %v617
    %v681 = vadd.f32 %v151, %v620
    %v682 = vadd.f32 %v152, %v622
    %v683 = vadd.f32 %v153, %v625
    %v684 = vadd.f32 %v154, %v627
    %v685 = vadd.f32 %v155, %v630
    %v686 = vadd.f32 %v156, %v632
    %v687 = vadd.f32 %v157, %v635
    %v688 = vadd.f32 %v158, %v637
    %v689 = vadd.f32 %v159, %v640
    %v690 = vadd.f32 %v160, %v642
    %v691 = vadd.f32 %v161, %v645
    %v692 = vadd.f32 %v162, %v647
    %v693 = vadd.f32 %v163, %v650
    %v694 = vadd.f32 %v164, %v652
    %v695 = vadd.f32 %v165, %v655
    %v696 = vadd.f32 %v166, %v657
    %v697 = vadd.f32 %v167, %v660
    %v698 = vadd.f32 %v168, %v662
    %v699 = vadd.f32 %v169, %v665
    %v700 = vadd.f32 %v170, %v667
    %701 = vst [vmem:[#allocation2] sm:$0xff] %v669
    %702 = vst [vmem:[#allocation2 + $0x8] sm:$0xff] %v670
    %703 = vst [vmem:[#allocation2 + $0x10] sm:$0xff] %v671
    %704 = vst [vmem:[#allocation2 + $0x18] sm:$0xff] %v672
    %705 = vst [vmem:[#allocation2 + $0x20] sm:$0xff] %v673
    %706 = vst [vmem:[#allocation2 + $0x28] sm:$0xff] %v674
    %707 = vst [vmem:[#allocation2 + $0x30] sm:$0xff] %v675
    %708 = vst [vmem:[#allocation2 + $0x38] sm:$0xff] %v676
    %709 = vst [vmem:[#allocation2 + $0x40] sm:$0xff] %v677
    %710 = vst [vmem:[#allocation2 + $0x48] sm:$0xff] %v678
    %711 = vst [vmem:[#allocation2 + $0x50] sm:$0xff] %v679
    %712 = vst [vmem:[#allocation2 + $0x58] sm:$0xff] %v680
    %713 = vst [vmem:[#allocation2 + $0x60] sm:$0xff] %v681
    %714 = vst [vmem:[#allocation2 + $0x68] sm:$0xff] %v682
    %715 = vst [vmem:[#allocation2 + $0x70] sm:$0xff] %v683
    %716 = vst [vmem:[#allocation2 + $0x78] sm:$0xff] %v684
    %717 = vst [vmem:[#allocation2 + $0x80] sm:$0xff] %v685
    %718 = vst [vmem:[#allocation2 + $0x88] sm:$0xff] %v686
    %719 = vst [vmem:[#allocation2 + $0x90] sm:$0xff] %v687
    %720 = vst [vmem:[#allocation2 + $0x98] sm:$0xff] %v688
    %721 = vst [vmem:[#allocation2 + $0xa0] sm:$0xff] %v689
    %722 = vst [vmem:[#allocation2 + $0xa8] sm:$0xff] %v690
    %723 = vst [vmem:[#allocation2 + $0xb0] sm:$0xff] %v691
    %724 = vst [vmem:[#allocation2 + $0xb8] sm:$0xff] %v692
    %725 = vst [vmem:[#allocation2 + $0xc0] sm:$0xff] %v693
    %726 = vst [vmem:[#allocation2 + $0xc8] sm:$0xff] %v694
    %727 = vst [vmem:[#allocation2 + $0xd0] sm:$0xff] %v695
    %728 = vst [vmem:[#allocation2 + $0xd8] sm:$0xff] %v696
    %729 = vst [vmem:[#allocation2 + $0xe0] sm:$0xff] %v697
    %730 = vst [vmem:[#allocation2 + $0xe8] sm:$0xff] %v698
    %731 = vst [vmem:[#allocation2 + $0xf0] sm:$0xff] %v699
    %732 = vst [vmem:[#allocation2 + $0xf8] sm:$0xff] %v700
    // Predicated region
    $region62: #{tpu_custom_call.1} parent=1 // pred_check
      %p733 = pneg %p97
    $region63: #{tpu_custom_call.1} parent=1 // pred_check_branch
      %735 = sbr.rel (%p733) target = $region65
    $region64: #{tpu_custom_call.1} parent=1 // pred_region
      %v736 = vld [vmem:[#allocation2] sm:$0xff]
      %v737 = vld [vmem:[#allocation2 + $0x8] sm:$0xff]
      %v738 = vld [vmem:[#allocation2 + $0x10] sm:$0xff]
      %v739 = vld [vmem:[#allocation2 + $0x18] sm:$0xff]
      %v740 = vld [vmem:[#allocation2 + $0x20] sm:$0xff]
      %v741 = vld [vmem:[#allocation2 + $0x28] sm:$0xff]
      %v742 = vld [vmem:[#allocation2 + $0x30] sm:$0xff]
      %v743 = vld [vmem:[#allocation2 + $0x38] sm:$0xff]
      %v744 = vld [vmem:[#allocation2 + $0x40] sm:$0xff]
      %v745 = vld [vmem:[#allocation2 + $0x48] sm:$0xff]
      %v746 = vld [vmem:[#allocation2 + $0x50] sm:$0xff]
      %v747 = vld [vmem:[#allocation2 + $0x58] sm:$0xff]
      %v748 = vld [vmem:[#allocation2 + $0x60] sm:$0xff]
      %v749 = vld [vmem:[#allocation2 + $0x68] sm:$0xff]
      %v750 = vld [vmem:[#allocation2 + $0x70] sm:$0xff]
      %v751 = vld [vmem:[#allocation2 + $0x78] sm:$0xff]
      %v752 = vld [vmem:[#allocation2 + $0x80] sm:$0xff]
      %v753 = vld [vmem:[#allocation2 + $0x88] sm:$0xff]
      %v754 = vld [vmem:[#allocation2 + $0x90] sm:$0xff]
      %v755 = vld [vmem:[#allocation2 + $0x98] sm:$0xff]
      %v756 = vld [vmem:[#allocation2 + $0xa0] sm:$0xff]
      %v757 = vld [vmem:[#allocation2 + $0xa8] sm:$0xff]
      %v758 = vld [vmem:[#allocation2 + $0xb0] sm:$0xff]
      %v759 = vld [vmem:[#allocation2 + $0xb8] sm:$0xff]
      %v760 = vld [vmem:[#allocation2 + $0xc0] sm:$0xff]
      %v761 = vld [vmem:[#allocation2 + $0xc8] sm:$0xff]
      %v762 = vld [vmem:[#allocation2 + $0xd0] sm:$0xff]
      %v763 = vld [vmem:[#allocation2 + $0xd8] sm:$0xff]
      %v764 = vld [vmem:[#allocation2 + $0xe0] sm:$0xff]
      %v765 = vld [vmem:[#allocation2 + $0xe8] sm:$0xff]
      %v766 = vld [vmem:[#allocation2 + $0xf0] sm:$0xff]
      %v767 = vld [vmem:[#allocation2 + $0xf8] sm:$0xff]
      %v768 = vld [vmem:[#allocation3] sm:$0xff]
      %v769 = vld [vmem:[%s3] sm:$0xff]
      %v771 = vunpack.c.l.b16 %v769
      %v772 = vunpack.c.h.b16 %v769
      %v773 = vpack.c.b16 %v771, %v771
      %v774 = vpack.c.b16 %v772, %v772
      %777 = vmatpush.msra.mxu0 %v751
      %778 = vmatpush.msra.mxu0 %v750
      %779 = vmatpush.msra.mxu0 %v749
      %780 = vmatpush.msra.mxu0 %v748
      %781 = vmatpush.msra.mxu0 %v747
      %782 = vmatpush.msra.mxu0 %v746
      %783 = vmatpush.msra.mxu0 %v745
      %784 = vmatpush.msra.mxu0 %v744
      %785 = vmatpush.msra.mxu0 %v743
      %786 = vmatpush.msra.mxu0 %v742
      %787 = vmatpush.msra.mxu0 %v741
      %788 = vmatpush.msra.mxu0 %v740
      %789 = vmatpush.msra.mxu0 %v739
      %790 = vmatpush.msra.mxu0 %v738
      %791 = vmatpush.msra.mxu0 %v737
      %792 = vmatpush.msra.mxu0 %v736
      %793 = vmatmul.bf16.gmra.mxu0 %v773
      %v794 = vpop.f32.mrf.mxu0
      %v795 = vadd.f32 0.0, %v794
      %v796 = vpop.f32.mrf.mxu0
      %797 = vdwg.mxu0
      %798 = vmatpush.msra.mxu0 %v767
      %799 = vmatpush.msra.mxu0 %v766
      %800 = vmatpush.msra.mxu0 %v765
      %801 = vmatpush.msra.mxu0 %v764
      %802 = vmatpush.msra.mxu0 %v763
      %803 = vmatpush.msra.mxu0 %v762
      %804 = vmatpush.msra.mxu0 %v761
      %805 = vmatpush.msra.mxu0 %v760
      %806 = vmatpush.msra.mxu0 %v759
      %807 = vmatpush.msra.mxu0 %v758
      %808 = vmatpush.msra.mxu0 %v757
      %809 = vmatpush.msra.mxu0 %v756
      %810 = vmatpush.msra.mxu0 %v755
      %811 = vmatpush.msra.mxu0 %v754
      %812 = vmatpush.msra.mxu0 %v753
      %813 = vmatpush.msra.mxu0 %v752
      %814 = vmatmul.bf16.gmra.mxu0 %v774
      %v815 = vpop.f32.mrf.mxu0
      %v816 = vadd.f32 %v795, %v815
      %v817 = vpop.f32.mrf.mxu0
      %818 = vdwg.mxu0
      %v819 = vadd.f32 %v768, %v816
      %820 = vst [vmem:[#allocation3] sm:$0xff] %v819
      %v821 = vld [vmem:[#allocation4] sm:$0x1]
      %v822 = vmul.f32 %v736, %v736
      %v823 = vmul.f32 %v737, %v737
      %v824 = vmul.f32 %v738, %v738
      %v825 = vmul.f32 %v739, %v739
      %v826 = vmul.f32 %v740, %v740
      %v827 = vmul.f32 %v741, %v741
      %v828 = vmul.f32 %v742, %v742
      %v829 = vmul.f32 %v743, %v743
      %v830 = vmul.f32 %v744, %v744
      %v831 = vmul.f32 %v745, %v745
      %v832 = vmul.f32 %v746, %v746
      %v833 = vmul.f32 %v747, %v747
      %v834 = vmul.f32 %v748, %v748
      %v835 = vmul.f32 %v749, %v749
      %v836 = vmul.f32 %v750, %v750
      %v837 = vmul.f32 %v751, %v751
      %v838 = vmul.f32 %v752, %v752
      %v839 = vmul.f32 %v753, %v753
      %v840 = vmul.f32 %v754, %v754
      %v841 = vmul.f32 %v755, %v755
      %v842 = vmul.f32 %v756, %v756
      %v843 = vmul.f32 %v757, %v757
      %v844 = vmul.f32 %v758, %v758
      %v845 = vmul.f32 %v759, %v759
      %v846 = vmul.f32 %v760, %v760
      %v847 = vmul.f32 %v761, %v761
      %v848 = vmul.f32 %v762, %v762
      %v849 = vmul.f32 %v763, %v763
      %v850 = vmul.f32 %v764, %v764
      %v851 = vmul.f32 %v765, %v765
      %v852 = vmul.f32 %v766, %v766
      %v853 = vmul.f32 %v767, %v767
      %v854 = vadd.f32 %v822, %v823
      %v855 = vadd.f32 %v854, %v824
      %v856 = vadd.f32 %v855, %v825
      %v857 = vadd.f32 %v856, %v826
      %v858 = vadd.f32 %v857, %v827
      %v859 = vadd.f32 %v858, %v828
      %v860 = vadd.f32 %v859, %v829
      %v861 = vadd.f32 %v860, %v830
      %v862 = vadd.f32 %v861, %v831
      %v863 = vadd.f32 %v862, %v832
      %v864 = vadd.f32 %v863, %v833
      %v865 = vadd.f32 %v864, %v834
      %v866 = vadd.f32 %v865, %v835
      %v867 = vadd.f32 %v866, %v836
      %v868 = vadd.f32 %v867, %v837
      %v869 = vadd.f32 %v868, %v838
      %v870 = vadd.f32 %v869, %v839
      %v871 = vadd.f32 %v870, %v840
      %v872 = vadd.f32 %v871, %v841
      %v873 = vadd.f32 %v872, %v842
      %v874 = vadd.f32 %v873, %v843
      %v875 = vadd.f32 %v874, %v844
      %v876 = vadd.f32 %v875, %v845
      %v877 = vadd.f32 %v876, %v846
      %v878 = vadd.f32 %v877, %v847
      %v879 = vadd.f32 %v878, %v848
      %v880 = vadd.f32 %v879, %v849
      %v881 = vadd.f32 %v880, %v850
      %v882 = vadd.f32 %v881, %v851
      %v883 = vadd.f32 %v882, %v852
      %v884 = vadd.f32 %v883, %v853
      %v885 = vrot.slane %v884, 4
      %v886 = vadd.f32 %v884, %v885
      %v887 = vrot.slane %v886, 2
      %v888 = vadd.f32 %v886, %v887
      %v889 = vrot.slane %v888, 1
      %v890 = vadd.f32 %v888, %v889
      %v891 = vadd.f32 %v821, %v890
      %892 = vst [vmem:[#allocation4] sm:$0x1] %v891
    $region65: #{tpu_custom_call.1} parent=1 // pred_fallthru
      _
    // Predicated region
    $region66: #{tpu_custom_call.1} parent=1 // pred_check
      _
    $region67: #{tpu_custom_call.1} parent=1 // pred_check_branch
      %894 = sbr.rel (%p98) target = $region69
    $region68: #{tpu_custom_call.1} parent=1 // pred_region
      %s895 = sld [smem:[#allocation6]]
      %p896 = scmp.gt.s32.totalorder %s895, 1
      %s897 = scalar_select %p896, %s895, 1
      %s898 = scvt.s32.f32 %s897
      %v899 = vld [vmem:[#allocation3] sm:$0xff]
      %v900 = vstv %s898
      %v901 = vrcp.pop %v900
      %v902 = vmul.f32 %v900, %v901
      %v903 = vsub.f32 1.0, %v902
      %v904 = vmul.f32 %v901, %v903
      %v905 = vadd.f32 %v901, %v904
      %vm906 = vweird.f32 %v900
      %vm907 = vweird.f32 %v901
      %vm908 = vmor %vm906, %vm907
      %v909 = vsel %vm908, %v901, %v905
      %v910 = vand.u32 2147483647, %v900
      %vm911 = vcmp.eq.f32.partialorder %v910, 8.507059e+37
      %v912 = vand.u32 %v900, 2147483648
      %v913 = vor.u32 1.1754944e-38, %v912
      %v914 = vsel %vm911, %v913, %v909
      %v915 = vmul.f32 %v899, %v914
      %v916 = vld [vmem:[#allocation4] sm:$0x1]
      %v917 = vmul.f32 %v916, %v914
      %v918 = vmul.f32 %v915, %v915
      %920 = vst [vmem:[#allocation1] sm:$0xff] %v918
      %s921 = scalar_lea.vmem [#allocation1], 7
      %v922 = vld [vmem:[%s921] ss:$9 sm:$0xff]
      %v924 = vsub.f32 %v917, %v922
      %v925 = vmax.f32 %v924, 0.0
      %v926 = vadd.f32 %v925, 1e-05
      %v927 = vrsqrt.pop %v926
      %v928 = vmul.f32 %v927, %v926
      %v929 = vmul.f32 %v928, %v927
      %v930 = vmul.f32 0.5, %v929
      %v931 = vsub.f32 1.5, %v930
      %v932 = vmul.f32 %v927, %v931
      %vm933 = vweird.f32 %v926
      %vm934 = vweird.f32 %v927
      %vm935 = vmor %vm933, %vm934
      %v936 = vsel %vm935, %v927, %v932
      %v937 = vld [vmem:[%s6] sm:$0xff]
      %939 = vset.pattern.permute.xlu0 0
      %940 = vperm.xlu0 %939, %v937
      %v941 = vpop.permute.xlu0 %940
      %v943 = vmul.f32 %v899, %v941
      %v944 = vperm.slane %v915, 7
      %v945 = vsub.f32 %v943, %v944
      %v946 = vld [vmem:[%s4] sm:$0x1]
      %v947 = vmul.f32 %v936, %v946
      %v949 = vperm.slane %v947, 0
      %v951 = vmul.f32 %v945, %v949
      %v952 = vld [vmem:[%s5] sm:$0x1]
      %v954 = vperm.slane %v952, 0
      %v956 = vadd.f32 %v951, %v954
      %v957 = vld [vmem:[#allocation12] sm:$0xff]
      %v958 = vadd.f32 %v956, %v957
      %v959 = vld [vmem:[#allocation13] sm:$0xff]
      %v960 = vld [vmem:[#allocation13 + $0x8] sm:$0xff]
      %v961 = vld [vmem:[#allocation13 + $0x10] sm:$0xff]
      %v962 = vld [vmem:[#allocation13 + $0x18] sm:$0xff]
      %v963 = vld [vmem:[#allocation13 + $0x20] sm:$0xff]
      %v964 = vld [vmem:[#allocation13 + $0x28] sm:$0xff]
      %v965 = vld [vmem:[#allocation13 + $0x30] sm:$0xff]
      %v966 = vld [vmem:[#allocation13 + $0x38] sm:$0xff]
      %v967 = vld [vmem:[#allocation13 + $0x40] sm:$0xff]
      %v968 = vld [vmem:[#allocation13 + $0x48] sm:$0xff]
      %v969 = vld [vmem:[#allocation13 + $0x50] sm:$0xff]
      %v970 = vld [vmem:[#allocation13 + $0x58] sm:$0xff]
      %v971 = vld [vmem:[#allocation13 + $0x60] sm:$0xff]
      %v972 = vld [vmem:[#allocation13 + $0x68] sm:$0xff]
      %v973 = vld [vmem:[#allocation13 + $0x70] sm:$0xff]
      %v974 = vld [vmem:[#allocation13 + $0x78] sm:$0xff]
      %v975 = vld [vmem:[%s9] sm:$0x1]
      %v977 = vperm.slane %v975, 0
      %979 = vmatpush.msra.mxu0 %v974
      %980 = vmatpush.msra.mxu0 %v973
      %981 = vmatpush.msra.mxu0 %v972
      %982 = vmatpush.msra.mxu0 %v971
      %983 = vmatpush.msra.mxu0 %v970
      %984 = vmatpush.msra.mxu0 %v969
      %985 = vmatpush.msra.mxu0 %v968
      %986 = vmatpush.msra.mxu0 %v967
      %987 = vmatpush.msra.mxu0 %v966
      %988 = vmatpush.msra.mxu0 %v965
      %989 = vmatpush.msra.mxu0 %v964
      %990 = vmatpush.msra.mxu0 %v963
      %991 = vmatpush.msra.mxu0 %v962
      %992 = vmatpush.msra.mxu0 %v961
      %993 = vmatpush.msra.mxu0 %v960
      %994 = vmatpush.msra.mxu0 %v959
      %995 = vmatmul.f32.gmra.mxu0 %v958
      %v996 = vpop.f32.mrf.mxu0
      %v997 = vadd.f32 %v977, %v996
      %998 = vdwg.mxu0
      %999 = vst [vmem:[#allocation15] sm:$0xff] %v997
    $region69: #{tpu_custom_call.1} parent=1 // pred_fallthru
      _
    // Predicated region
    $region70: #{tpu_custom_call.1} parent=1 // pred_check
      _
    $region71: #{tpu_custom_call.1} parent=1 // pred_check_branch
      %1001 = sbr.rel (0) target = $region73
    $region72: #{tpu_custom_call.1} parent=1 // pred_region
      %1003 = vsyncadd [#allocation9], 0
      %s1005 = sshll.u32 [#allocation15], 4
      %s1006 = int_to_ptr.vmem [resolvable:$true] %s1005
      %s1007 = sshll.u32 %s10, 4
      %s1008 = int_to_ptr.hbm [resolvable:$true] %s1007
      %1010 = dma.vmem_to_hbm [thread:$0]  %s1006, 128, %s1008, [#allocation9]
    $region73: #{tpu_custom_call.1} parent=1 // pred_fallthru
      _
    // Predicated region
    $region74: #{tpu_custom_call.1} parent=1 // pred_check
      _
    $region75: #{tpu_custom_call.1} parent=1 // pred_check_branch
      %1012 = sbr.rel (0) target = $region77
    $region76: #{tpu_custom_call.1} parent=1 // pred_region
      %1014 = dma.done [#allocation9], 128
    $region77: #{tpu_custom_call.1} parent=1 // pred_fallthru
      _
    %1015 = vsyncpa [#allocation8], 1
    %1016 = vsyncpa [#allocation11], 1
    %1017 = vsyncpa [#allocation14], 1
    %1018 = vsyncpa [#allocation9], 1

</llo_original>
